<compile_context>
chip_gen: v5e
topology: v5e:2x2
jax: 0.10.0
libtpu: 0.0.40
codegen_flags: <defaults>
</compile_context>

<pallas_src>
import functools

import jax
import jax.numpy as jnp
from jax.experimental import pallas as pl
from jax.experimental.pallas import tpu as pltpu

LANE = 128
SUBLANE = 8


def _round_up(n, m):
    return ((n + m - 1) // m) * m


# ----------------------------------------------------------------------------
# Kernel: one Decoder step per grid iteration, h/c carried in VMEM
# ----------------------------------------------------------------------------
def _decoder_seq_kernel(x_ref, h0_ref, c0_ref, wgx_ref, wgh_ref, bg_ref,
                        w1_ref, b1_ref, w2_ref, b2_ref,
                        out_ref, h_ref, c_ref, *, hp):
    """Decoder forward for step t = pl.program_id(0).

    x_ref   : [1, Bp, Tp] f32   (this step's input, pipelined)
    h0_ref  : [Bp, Hp]     f32   (initial hidden)
    c0_ref  : [Bp, Hp]     f32   (initial cell)
    wgx_ref : [Tp, 4*Hp]   bf16  (input->gates, per-gate lane-padded)
    wgh_ref : [Hp, 4*Hp]   bf16  (hidden->gates)
    bg_ref  : [1, 4*Hp]    f32   (b_ih + b_hh)
    w1_ref  : [Hp, Hp] bf16, b1_ref: [1, Hp] f32
    w2_ref  : [Hp, Tp] bf16, b2_ref: [1, Tp] f32
    out_ref : [1, Bp, Tp]  f32   (per-step output)
    h_ref   : [Bp, Hp]     f32   (VMEM-resident carry across grid steps)
    c_ref   : [Bp, Hp]     f32   (VMEM-resident carry across grid steps)
    """
    t = pl.program_id(0)

    @pl.when(t == 0)
    def _():
        h_ref[...] = h0_ref[...]
        c_ref[...] = c0_ref[...]

    # ---- LSTMCell: 4 gates in one lane-dense [Bp, 4*Hp] pass ---------------
    x = x_ref[0].astype(jnp.bfloat16)                              # [Bp, Tp]
    h = h_ref[...]                                                 # [Bp, Hp]
    gates = (jnp.dot(x, wgx_ref[...], preferred_element_type=jnp.float32)
             + jnp.dot(h.astype(jnp.bfloat16), wgh_ref[...],
                       preferred_element_type=jnp.float32)
             + bg_ref[...])                                        # [Bp, 4Hp]

    # Lane-aligned gate slices (each gate occupies whole 128-lane vregs).
    i_g = jax.nn.sigmoid(gates[:, 0 * hp:1 * hp])                  # input
    f_g = jax.nn.sigmoid(gates[:, 1 * hp:2 * hp])                  # forget
    g_g = jnp.tanh(gates[:, 2 * hp:3 * hp])                        # candidate
    o_g = jax.nn.sigmoid(gates[:, 3 * hp:4 * hp])                  # output

    c_new = f_g * c_ref[...] + i_g * g_g                           # [Bp, Hp]
    h_new = o_g * jnp.tanh(c_new)                                  # [Bp, Hp]
    # (padded lanes: preactivation 0, c-pad 0 -> padding of c_new/h_new stays 0)
    c_ref[...] = c_new
    h_ref[...] = h_new

    # ---- fc1 -> ReLU -> dropout(eval: identity) -> fc2 ---------------------
    y = jnp.dot(h_new.astype(jnp.bfloat16), w1_ref[...],
                preferred_element_type=jnp.float32) + b1_ref[...]  # [Bp, Hp]
    y = jnp.maximum(y, 0.0)
    # TODO(synk): nn.Dropout reproduced in eval mode (identity); training-mode
    # stochastic masking would need pltpu.prng_seed/prng_random_bits + rescale.
    out = jnp.dot(y.astype(jnp.bfloat16), w2_ref[...],
                  preferred_element_type=jnp.float32) + b2_ref[...]  # [Bp, Tp]
    out_ref[0] = out


# ----------------------------------------------------------------------------
# One-time weight packing (no per-step transposes / pads / casts)
# ----------------------------------------------------------------------------
def prepare_decoder_params(params, target_size, hidden_size):
    T, H = target_size, hidden_size
    Hp = _round_up(H, LANE)
    Tp = _round_up(T, LANE)

    def pad_gates_t(w, rows_p):
        # w: [4H, in_dim] -> transpose -> per-gate lane-pad -> [rows_p, 4*Hp]
        wt = w.T
        blocks = [jnp.pad(wt[:, k * H:(k + 1) * H], ((0, 0), (0, Hp - H)))
                  for k in range(4)]
        wt = jnp.concatenate(blocks, axis=1)
        return jnp.pad(wt, ((0, rows_p - wt.shape[0]), (0, 0)))

    wg_x = pad_gates_t(params["w_ih"], Tp).astype(jnp.bfloat16)    # [Tp, 4Hp]
    wg_h = pad_gates_t(params["w_hh"], Hp).astype(jnp.bfloat16)    # [Hp, 4Hp]
    b = params["b_ih"] + params["b_hh"]                            # [4H]
    bg = jnp.concatenate(
        [jnp.pad(b[k * H:(k + 1) * H], (0, Hp - H)) for k in range(4)]
    )[None, :].astype(jnp.float32)                                 # [1, 4Hp]

    w1p = jnp.pad(params["w1"].T,
                  ((0, Hp - H), (0, Hp - H))).astype(jnp.bfloat16)  # [Hp, Hp]
    b1p = jnp.pad(params["b1"], (0, Hp - H))[None, :].astype(jnp.float32)
    w2p = jnp.pad(params["w2"].T,
                  ((0, Hp - H), (0, Tp - T))).astype(jnp.bfloat16)  # [Hp, Tp]
    b2p = jnp.pad(params["b2"], (0, Tp - T))[None, :].astype(jnp.float32)

    return {"wg_x": wg_x, "wg_h": wg_h, "bg": bg,
            "w1": w1p, "b1": b1p, "w2": w2p, "b2": b2p}


# ----------------------------------------------------------------------------
# Fused-sequence forward: one pallas_call for the whole decode loop
# ----------------------------------------------------------------------------
@functools.partial(jax.jit, static_argnames=("target_size", "hidden_size"))
def decoder_forward_seq(x_seq, hidden, cell, prepared, *,
                        target_size, hidden_size):
    """x_seq: [S, B, T]; hidden, cell: [1, B, H] (or [B, H]).

    Applies the Decoder forward at each step of x_seq, carrying hidden/cell in
    VMEM across steps. Weights are DMA'd into VMEM once for the whole sequence.
    Returns (out_seq [S,B,T], hidden [B,H], cell [B,H]).
    """
    T, H = target_size, hidden_size
    Hp = _round_up(H, LANE)
    Tp = _round_up(T, LANE)

    # Squeeze only the leading dim (safe for B == 1, unlike full .squeeze()).
    if hidden.ndim == 3:
        hidden = hidden[0]
    if cell.ndim == 3:
        cell = cell[0]

    S, B = x_seq.shape[0], x_seq.shape[1]
    Bp = _round_up(max(B, SUBLANE), SUBLANE)     # fill sublanes -> full vregs

    # One-time, whole-sequence pads (amortized over all decode steps).
    x_p = jnp.pad(x_seq.astype(jnp.float32),
                  ((0, 0), (0, Bp - B), (0, Tp - T)))               # [S,Bp,Tp]
    h_p = jnp.pad(hidden.astype(jnp.float32), ((0, Bp - B), (0, Hp - H)))
    c_p = jnp.pad(cell.astype(jnp.float32), ((0, Bp - B), (0, Hp - H)))

    const = lambda t: (0, 0)
    kernel = functools.partial(_decoder_seq_kernel, hp=Hp)

    out_seq, h_out, c_out = pl.pallas_call(
        kernel,
        grid=(S,),
        out_shape=(jax.ShapeDtypeStruct((S, Bp, Tp), jnp.float32),
                   jax.ShapeDtypeStruct((Bp, Hp), jnp.float32),
                   jax.ShapeDtypeStruct((Bp, Hp), jnp.float32)),
        in_specs=[
            pl.BlockSpec((1, Bp, Tp), lambda t: (t, 0, 0)),  # x_t (pipelined)
            pl.BlockSpec((Bp, Hp), const),                   # h0
            pl.BlockSpec((Bp, Hp), const),                   # c0
            pl.BlockSpec((Tp, 4 * Hp), const),               # wg_x (resident)
            pl.BlockSpec((Hp, 4 * Hp), const),               # wg_h (resident)
            pl.BlockSpec((1, 4 * Hp), const),                # bg
            pl.BlockSpec((Hp, Hp), const),                   # w1
            pl.BlockSpec((1, Hp), const),                    # b1
            pl.BlockSpec((Hp, Tp), const),                   # w2
            pl.BlockSpec((1, Tp), const),                    # b2
        ],
        out_specs=(
            pl.BlockSpec((1, Bp, Tp), lambda t: (t, 0, 0)),  # out_t
            pl.BlockSpec((Bp, Hp), const),                   # h carry (resident)
            pl.BlockSpec((Bp, Hp), const),                   # c carry (resident)
        ),
        compiler_params=pltpu.CompilerParams(
            dimension_semantics=("arbitrary",)),             # recurrence axis
    )(x_p, h_p, c_p, prepared["wg_x"], prepared["wg_h"], prepared["bg"],
      prepared["w1"], prepared["b1"], prepared["w2"], prepared["b2"])

    return out_seq[:, :B, :T], h_out[:B, :H], c_out[:B, :H]


def decoder_forward(x, hidden, cell, prepared, *, target_size, hidden_size):
    """Single Decoder step (exact PyTorch module semantics): x [B, T]."""
    out_seq, h_new, c_new = decoder_forward_seq(
        x[None], hidden, cell, prepared,
        target_size=target_size, hidden_size=hidden_size)
    return out_seq[0], h_new, c_new


# ----------------------------------------------------------------------------
# Parameter init (PyTorch-like shapes) and pure-JAX reference
# ----------------------------------------------------------------------------
def init_decoder_params(key, target_size, hidden_size):
    ks = jax.random.split(key, 8)
    scale = 1.0 / jnp.sqrt(hidden_size)
    return {
        # nn.LSTMCell(target_size, hidden_size)
        "w_ih": jax.random.uniform(ks[0], (4 * hidden_size, target_size),
                                   jnp.float32, -scale, scale),
        "w_hh": jax.random.uniform(ks[1], (4 * hidden_size, hidden_size),
                                   jnp.float32, -scale, scale),
        "b_ih": jax.random.uniform(ks[2], (4 * hidden_size,),
                                   jnp.float32, -scale, scale),
        "b_hh": jax.random.uniform(ks[3], (4 * hidden_size,),
                                   jnp.float32, -scale, scale),
        # nn.Linear(hidden_size, hidden_size)
        "w1": jax.random.uniform(ks[4], (hidden_size, hidden_size),
                                 jnp.float32, -scale, scale),
        "b1": jax.random.uniform(ks[5], (hidden_size,),
                                 jnp.float32, -scale, scale),
        # nn.Linear(hidden_size, target_size)
        "w2": jax.random.uniform(ks[6], (target_size, hidden_size),
                                 jnp.float32, -scale, scale),
        "b2": jax.random.uniform(ks[7], (target_size,),
                                 jnp.float32, -scale, scale),
    }


def _reference_step(x, h, c, p):
    """Pure-JAX reference of the PyTorch forward, mirroring the kernel's
    bf16 matmul-operand rounding (f32 accumulation, f32 bias/elementwise)."""
    rd = lambda a: a.astype(jnp.bfloat16).astype(jnp.float32)
    H = h.shape[-1]
    gates = (rd(x) @ rd(p["w_ih"]).T + rd(h) @ rd(p["w_hh"]).T
             + (p["b_ih"] + p["b_hh"]))
    i = jax.nn.sigmoid(gates[:, :H])
    f = jax.nn.sigmoid(gates[:, H:2 * H])
    g = jnp.tanh(gates[:, 2 * H:3 * H])
    o = jax.nn.sigmoid(gates[:, 3 * H:])
    c_new = f * c + i * g
    h_new = o * jnp.tanh(c_new)
    y = jnp.maximum(rd(h_new) @ rd(p["w1"]).T + p["b1"], 0.0)
    out = rd(y) @ rd(p["w2"]).T + p["b2"]
    return out, h_new, c_new


if __name__ == "__main__":
    TARGET_SIZE = 8
    HIDDEN_SIZE = 32
    BATCH = 2
    SEQ_LEN = 8

    key = jax.random.PRNGKey(0)
    kx, kh, kc, kp = jax.random.split(key, 4)

    x_seq = jax.random.normal(kx, (SEQ_LEN, BATCH, TARGET_SIZE), jnp.float32)
    hidden = jax.random.normal(kh, (1, BATCH, HIDDEN_SIZE), jnp.float32)
    cell = jax.random.normal(kc, (1, BATCH, HIDDEN_SIZE), jnp.float32)

    params = init_decoder_params(kp, TARGET_SIZE, HIDDEN_SIZE)
    prepared = prepare_decoder_params(params, TARGET_SIZE, HIDDEN_SIZE)
    jax.block_until_ready(prepared)   # one-time packing, outside decode loop

    # ---- single step: exact module semantics -------------------------------
    out, h1, c1 = decoder_forward(
        x_seq[0], hidden, cell, prepared,
        target_size=TARGET_SIZE, hidden_size=HIDDEN_SIZE)
    jax.block_until_ready((out, h1, c1))

    ref_out, ref_h, ref_c = _reference_step(x_seq[0], hidden[0], cell[0], params)
    assert out.shape == (BATCH, TARGET_SIZE)
    assert h1.shape == (BATCH, HIDDEN_SIZE)
    assert c1.shape == (BATCH, HIDDEN_SIZE)
    assert jnp.allclose(out, ref_out, atol=2e-3, rtol=2e-3), "output mismatch"
    assert jnp.allclose(h1, ref_h, atol=2e-3, rtol=2e-3), "hidden mismatch"
    assert jnp.allclose(c1, ref_c, atol=2e-3, rtol=2e-3), "cell mismatch"

    # ---- fused sequence: one pallas_call for all decode steps --------------
    out_seq, h_n, c_n = decoder_forward_seq(
        x_seq, hidden, cell, prepared,
        target_size=TARGET_SIZE, hidden_size=HIDDEN_SIZE)
    jax.block_until_ready((out_seq, h_n, c_n))

    rh, rc = hidden[0], cell[0]
    ref_outs = []
    for t in range(SEQ_LEN):
        ro, rh, rc = _reference_step(x_seq[t], rh, rc, params)
        ref_outs.append(ro)
    ref_out_seq = jnp.stack(ref_outs)

    assert out_seq.shape == (SEQ_LEN, BATCH, TARGET_SIZE)
    assert jnp.allclose(out_seq, ref_out_seq, atol=3e-3, rtol=3e-3), "seq out mismatch"
    assert jnp.allclose(h_n, rh, atol=3e-3, rtol=3e-3), "seq hidden mismatch"
    assert jnp.allclose(c_n, rc, atol=3e-3, rtol=3e-3), "seq cell mismatch"

    print("KERNEL_OK")
</pallas_src>

<mosaic_0001>
module attributes {stable_mosaic.version = 11 : i64} {
  func.func @_decoder_seq_kernel(%arg0: i32, %arg1: memref<1x8x128xf32, #tpu.memory_space<vmem>>, %arg2: memref<8x128xf32, #tpu.memory_space<vmem>>, %arg3: memref<8x128xf32, #tpu.memory_space<vmem>>, %arg4: memref<128x512xbf16, #tpu.memory_space<vmem>>, %arg5: memref<128x512xbf16, #tpu.memory_space<vmem>>, %arg6: memref<1x512xf32, #tpu.memory_space<vmem>>, %arg7: memref<128x128xbf16, #tpu.memory_space<vmem>>, %arg8: memref<1x128xf32, #tpu.memory_space<vmem>>, %arg9: memref<128x128xbf16, #tpu.memory_space<vmem>>, %arg10: memref<1x128xf32, #tpu.memory_space<vmem>>, %arg11: memref<1x8x128xf32, #tpu.memory_space<vmem>>, %arg12: memref<8x128xf32, #tpu.memory_space<vmem>>, %arg13: memref<8x128xf32, #tpu.memory_space<vmem>>) attributes {dimension_semantics = [#tpu.dimension_semantics<arbitrary>], iteration_bounds = array<i64: 1>, scalar_prefetch = 0 : i64, scratch_operands = 0 : i64, tpu.core_type = #tpu.core_type<tc>, window_params = [{transform_indices = @transform_0, window_bounds = array<i64: 1, 8, 128>}, {pipeline_mode = #tpu.pipeline_mode<synchronous>, transform_indices = @transform_1, window_bounds = array<i64: 8, 128>}, {pipeline_mode = #tpu.pipeline_mode<synchronous>, transform_indices = @transform_2, window_bounds = array<i64: 8, 128>}, {pipeline_mode = #tpu.pipeline_mode<synchronous>, transform_indices = @transform_3, window_bounds = array<i64: 128, 512>}, {pipeline_mode = #tpu.pipeline_mode<synchronous>, transform_indices = @transform_4, window_bounds = array<i64: 128, 512>}, {pipeline_mode = #tpu.pipeline_mode<synchronous>, transform_indices = @transform_5, window_bounds = array<i64: 1, 512>}, {pipeline_mode = #tpu.pipeline_mode<synchronous>, transform_indices = @transform_6, window_bounds = array<i64: 128, 128>}, {pipeline_mode = #tpu.pipeline_mode<synchronous>, transform_indices = @transform_7, window_bounds = array<i64: 1, 128>}, {pipeline_mode = #tpu.pipeline_mode<synchronous>, transform_indices = @transform_8, window_bounds = array<i64: 128, 128>}, {pipeline_mode = #tpu.pipeline_mode<synchronous>, transform_indices = @transform_9, window_bounds = array<i64: 1, 128>}, {transform_indices = @transform_10, window_bounds = array<i64: 1, 8, 128>}, {pipeline_mode = #tpu.pipeline_mode<synchronous>, transform_indices = @transform_11, window_bounds = array<i64: 8, 128>}, {pipeline_mode = #tpu.pipeline_mode<synchronous>, transform_indices = @transform_12, window_bounds = array<i64: 8, 128>}]} {
    %c0_i32 = arith.constant 0 : i32
    %0 = arith.cmpi eq, %arg0, %c0_i32 : i32
    %1 = arith.extui %0 : i1 to i32
    %c0_i32_0 = arith.constant 0 : i32
    %2 = arith.cmpi ne, %1, %c0_i32_0 : i32
    scf.if %2 {
      %c0_35 = arith.constant 0 : index
      %c0_36 = arith.constant 0 : index
      %61 = vector.load %arg2[%c0_35, %c0_36] : memref<8x128xf32, #tpu.memory_space<vmem>>, vector<8x128xf32>
      %c0_37 = arith.constant 0 : index
      %c0_38 = arith.constant 0 : index
      %62 = vector.load %arg12[%c0_37, %c0_38] : memref<8x128xf32, #tpu.memory_space<vmem>>, vector<8x128xf32>
      tpu.vector_store %arg12[%c0_37, %c0_38], %61 {strides = array<i32>} : memref<8x128xf32, #tpu.memory_space<vmem>>, vector<8x128xf32>,
      %c0_39 = arith.constant 0 : index
      %c0_40 = arith.constant 0 : index
      %63 = vector.load %arg3[%c0_39, %c0_40] : memref<8x128xf32, #tpu.memory_space<vmem>>, vector<8x128xf32>
      %c0_41 = arith.constant 0 : index
      %c0_42 = arith.constant 0 : index
      %64 = vector.load %arg13[%c0_41, %c0_42] : memref<8x128xf32, #tpu.memory_space<vmem>>, vector<8x128xf32>
      tpu.vector_store %arg13[%c0_41, %c0_42], %63 {strides = array<i32>} : memref<8x128xf32, #tpu.memory_space<vmem>>, vector<8x128xf32>,
    } else {
    }
    %c0 = arith.constant 0 : index
    %c0_1 = arith.constant 0 : index
    %c0_2 = arith.constant 0 : index
    %3 = vector.load %arg1[%c0, %c0_1, %c0_2] : memref<1x8x128xf32, #tpu.memory_space<vmem>>, vector<1x8x128xf32>
    %4 = vector.shape_cast %3 : vector<1x8x128xf32> to vector<8x128xf32>
    %5 = arith.truncf %4 : vector<8x128xf32> to vector<8x128xbf16>
    %c0_3 = arith.constant 0 : index
    %c0_4 = arith.constant 0 : index
    %6 = vector.load %arg12[%c0_3, %c0_4] : memref<8x128xf32, #tpu.memory_space<vmem>>, vector<8x128xf32>
    %c0_5 = arith.constant 0 : index
    %c0_6 = arith.constant 0 : index
    %7 = vector.load %arg4[%c0_5, %c0_6] : memref<128x512xbf16, #tpu.memory_space<vmem>>, vector<128x512xbf16>
    %cst = arith.constant dense<0.000000e+00> : vector<8x512xf32>
    %8 = tpu.matmul %5, %7, %cst {dimension_numbers = #tpu.dot_dimension_numbers<[1], [0], [0], [1], [0, 0, 1, 1], [], []>} : vector<8x128xbf16>, vector<128x512xbf16>, vector<8x512xf32> -> vector<8x512xf32>
    %9 = arith.truncf %6 : vector<8x128xf32> to vector<8x128xbf16>
    %c0_7 = arith.constant 0 : index
    %c0_8 = arith.constant 0 : index
    %10 = vector.load %arg5[%c0_7, %c0_8] : memref<128x512xbf16, #tpu.memory_space<vmem>>, vector<128x512xbf16>
    %cst_9 = arith.constant dense<0.000000e+00> : vector<8x512xf32>
    %11 = tpu.matmul %9, %10, %cst_9 {dimension_numbers = #tpu.dot_dimension_numbers<[1], [0], [0], [1], [0, 0, 1, 1], [], []>} : vector<8x128xbf16>, vector<128x512xbf16>, vector<8x512xf32> -> vector<8x512xf32>
    %12 = arith.addf %8, %11 : vector<8x512xf32>
    %c0_10 = arith.constant 0 : index
    %c0_11 = arith.constant 0 : index
    %13 = vector.load %arg6[%c0_10, %c0_11] : memref<1x512xf32, #tpu.memory_space<vmem>>, vector<1x512xf32>
    %14 = vector.broadcast %13 : vector<1x512xf32> to vector<8x512xf32>
    %15 = arith.addf %12, %14 : vector<8x512xf32>
    %16 = vector.extract_strided_slice %15 {offsets = [0, 0], sizes = [8, 128], strides = [1, 1]} : vector<8x512xf32> to vector<8x128xf32>
    %17 = arith.negf %16 : vector<8x128xf32>
    %18 = math.exp %17 : vector<8x128xf32>
    %cst_12 = arith.constant 1.000000e+00 : f32
    %19 = vector.broadcast %cst_12 : f32 to vector<8x128xf32>
    %20 = arith.addf %19, %18 : vector<8x128xf32>
    %21 = arith.divf %19, %20 : vector<8x128xf32>
    %22 = vector.extract_strided_slice %15 {offsets = [0, 128], sizes = [8, 128], strides = [1, 1]} : vector<8x512xf32> to vector<8x128xf32>
    %23 = arith.negf %22 : vector<8x128xf32>
    %24 = math.exp %23 : vector<8x128xf32>
    %cst_13 = arith.constant 1.000000e+00 : f32
    %25 = vector.broadcast %cst_13 : f32 to vector<8x128xf32>
    %26 = arith.addf %25, %24 : vector<8x128xf32>
    %27 = arith.divf %25, %26 : vector<8x128xf32>
    %28 = vector.extract_strided_slice %15 {offsets = [0, 256], sizes = [8, 128], strides = [1, 1]} : vector<8x512xf32> to vector<8x128xf32>
    %29 = math.tanh %28 : vector<8x128xf32>
    %30 = vector.extract_strided_slice %15 {offsets = [0, 384], sizes = [8, 128], strides = [1, 1]} : vector<8x512xf32> to vector<8x128xf32>
    %31 = arith.negf %30 : vector<8x128xf32>
    %32 = math.exp %31 : vector<8x128xf32>
    %cst_14 = arith.constant 1.000000e+00 : f32
    %33 = vector.broadcast %cst_14 : f32 to vector<8x128xf32>
    %34 = arith.addf %33, %32 : vector<8x128xf32>
    %35 = arith.divf %33, %34 : vector<8x128xf32>
    %c0_15 = arith.constant 0 : index
    %c0_16 = arith.constant 0 : index
    %36 = vector.load %arg13[%c0_15, %c0_16] : memref<8x128xf32, #tpu.memory_space<vmem>>, vector<8x128xf32>
    %37 = arith.mulf %27, %36 : vector<8x128xf32>
    %38 = arith.mulf %21, %29 : vector<8x128xf32>
    %39 = arith.addf %37, %38 : vector<8x128xf32>
    %40 = math.tanh %39 : vector<8x128xf32>
    %41 = arith.mulf %35, %40 : vector<8x128xf32>
    %c0_17 = arith.constant 0 : index
    %c0_18 = arith.constant 0 : index
    %42 = vector.load %arg13[%c0_17, %c0_18] : memref<8x128xf32, #tpu.memory_space<vmem>>, vector<8x128xf32>
    tpu.vector_store %arg13[%c0_17, %c0_18], %39 {strides = array<i32>} : memref<8x128xf32, #tpu.memory_space<vmem>>, vector<8x128xf32>,
    %c0_19 = arith.constant 0 : index
    %c0_20 = arith.constant 0 : index
    %43 = vector.load %arg12[%c0_19, %c0_20] : memref<8x128xf32, #tpu.memory_space<vmem>>, vector<8x128xf32>
    tpu.vector_store %arg12[%c0_19, %c0_20], %41 {strides = array<i32>} : memref<8x128xf32, #tpu.memory_space<vmem>>, vector<8x128xf32>,
    %44 = arith.truncf %41 : vector<8x128xf32> to vector<8x128xbf16>
    %c0_21 = arith.constant 0 : index
    %c0_22 = arith.constant 0 : index
    %45 = vector.load %arg7[%c0_21, %c0_22] : memref<128x128xbf16, #tpu.memory_space<vmem>>, vector<128x128xbf16>
    %cst_23 = arith.constant dense<0.000000e+00> : vector<8x128xf32>
    %46 = tpu.matmul %44, %45, %cst_23 {dimension_numbers = #tpu.dot_dimension_numbers<[1], [0], [0], [1], [0, 0, 1, 1], [], []>} : vector<8x128xbf16>, vector<128x128xbf16>, vector<8x128xf32> -> vector<8x128xf32>
    %c0_24 = arith.constant 0 : index
    %c0_25 = arith.constant 0 : index
    %47 = vector.load %arg8[%c0_24, %c0_25] : memref<1x128xf32, #tpu.memory_space<vmem>>, vector<1x128xf32>
    %48 = vector.broadcast %47 : vector<1x128xf32> to vector<8x128xf32>
    %49 = arith.addf %46, %48 : vector<8x128xf32>
    %cst_26 = arith.constant 0.000000e+00 : f32
    %50 = vector.broadcast %cst_26 : f32 to vector<8x128xf32>
    %51 = arith.maximumf %49, %50 : vector<8x128xf32>
    %52 = arith.truncf %51 : vector<8x128xf32> to vector<8x128xbf16>
    %c0_27 = arith.constant 0 : index
    %c0_28 = arith.constant 0 : index
    %53 = vector.load %arg9[%c0_27, %c0_28] : memref<128x128xbf16, #tpu.memory_space<vmem>>, vector<128x128xbf16>
    %cst_29 = arith.constant dense<0.000000e+00> : vector<8x128xf32>
    %54 = tpu.matmul %52, %53, %cst_29 {dimension_numbers = #tpu.dot_dimension_numbers<[1], [0], [0], [1], [0, 0, 1, 1], [], []>} : vector<8x128xbf16>, vector<128x128xbf16>, vector<8x128xf32> -> vector<8x128xf32>
    %c0_30 = arith.constant 0 : index
    %c0_31 = arith.constant 0 : index
    %55 = vector.load %arg10[%c0_30, %c0_31] : memref<1x128xf32, #tpu.memory_space<vmem>>, vector<1x128xf32>
    %56 = vector.broadcast %55 : vector<1x128xf32> to vector<8x128xf32>
    %57 = arith.addf %54, %56 : vector<8x128xf32>
    %c0_32 = arith.constant 0 : index
    %c0_33 = arith.constant 0 : index
    %c0_34 = arith.constant 0 : index
    %58 = vector.load %arg11[%c0_32, %c0_33, %c0_34] : memref<1x8x128xf32, #tpu.memory_space<vmem>>, vector<1x8x128xf32>
    %59 = vector.shape_cast %58 : vector<1x8x128xf32> to vector<8x128xf32>
    %60 = vector.shape_cast %57 : vector<8x128xf32> to vector<1x8x128xf32>
    tpu.vector_store %arg11[%c0_32, %c0_33, %c0_34], %60 {strides = array<i32>} : memref<1x8x128xf32, #tpu.memory_space<vmem>>, vector<1x8x128xf32>,
    return
  }
  func.func @transform_0(%arg0: i32) -> (i32, i32, i32) {
    %c0_i32 = arith.constant 0 : i32
    %c0_i32_0 = arith.constant 0 : i32
    %c0_i32_1 = arith.constant 0 : i32
    return %arg0, %c0_i32, %c0_i32_0 : i32, i32, i32
  }
  func.func @transform_1(%arg0: i32) -> (i32, i32) {
    %c0_i32 = arith.constant 0 : i32
    %c0_i32_0 = arith.constant 0 : i32
    %c0_i32_1 = arith.constant 0 : i32
    return %c0_i32, %c0_i32_0 : i32, i32
  }
  func.func @transform_2(%arg0: i32) -> (i32, i32) {
    %c0_i32 = arith.constant 0 : i32
    %c0_i32_0 = arith.constant 0 : i32
    %c0_i32_1 = arith.constant 0 : i32
    return %c0_i32, %c0_i32_0 : i32, i32
  }
  func.func @transform_3(%arg0: i32) -> (i32, i32) {
    %c0_i32 = arith.constant 0 : i32
    %c0_i32_0 = arith.constant 0 : i32
    %c0_i32_1 = arith.constant 0 : i32
    return %c0_i32, %c0_i32_0 : i32, i32
  }
  func.func @transform_4(%arg0: i32) -> (i32, i32) {
    %c0_i32 = arith.constant 0 : i32
    %c0_i32_0 = arith.constant 0 : i32
    %c0_i32_1 = arith.constant 0 : i32
    return %c0_i32, %c0_i32_0 : i32, i32
  }
  func.func @transform_5(%arg0: i32) -> (i32, i32) {
    %c0_i32 = arith.constant 0 : i32
    %c0_i32_0 = arith.constant 0 : i32
    %c0_i32_1 = arith.constant 0 : i32
    return %c0_i32, %c0_i32_0 : i32, i32
  }
  func.func @transform_6(%arg0: i32) -> (i32, i32) {
    %c0_i32 = arith.constant 0 : i32
    %c0_i32_0 = arith.constant 0 : i32
    %c0_i32_1 = arith.constant 0 : i32
    return %c0_i32, %c0_i32_0 : i32, i32
  }
  func.func @transform_7(%arg0: i32) -> (i32, i32) {
    %c0_i32 = arith.constant 0 : i32
    %c0_i32_0 = arith.constant 0 : i32
    %c0_i32_1 = arith.constant 0 : i32
    return %c0_i32, %c0_i32_0 : i32, i32
  }
  func.func @transform_8(%arg0: i32) -> (i32, i32) {
    %c0_i32 = arith.constant 0 : i32
    %c0_i32_0 = arith.constant 0 : i32
    %c0_i32_1 = arith.constant 0 : i32
    return %c0_i32, %c0_i32_0 : i32, i32
  }
  func.func @transform_9(%arg0: i32) -> (i32, i32) {
    %c0_i32 = arith.constant 0 : i32
    %c0_i32_0 = arith.constant 0 : i32
    %c0_i32_1 = arith.constant 0 : i32
    return %c0_i32, %c0_i32_0 : i32, i32
  }
  func.func @transform_10(%arg0: i32) -> (i32, i32, i32) {
    %c0_i32 = arith.constant 0 : i32
    %c0_i32_0 = arith.constant 0 : i32
    %c0_i32_1 = arith.constant 0 : i32
    return %arg0, %c0_i32, %c0_i32_0 : i32, i32, i32
  }
  func.func @transform_11(%arg0: i32) -> (i32, i32) {
    %c0_i32 = arith.constant 0 : i32
    %c0_i32_0 = arith.constant 0 : i32
    %c0_i32_1 = arith.constant 0 : i32
    return %c0_i32, %c0_i32_0 : i32, i32
  }
  func.func @transform_12(%arg0: i32) -> (i32, i32) {
    %c0_i32 = arith.constant 0 : i32
    %c0_i32_0 = arith.constant 0 : i32
    %c0_i32_1 = arith.constant 0 : i32
    return %c0_i32, %c0_i32_0 : i32, i32
  }
}

</mosaic_0001>

<llo_original>
// kernel: decoder_forward_seq.1
$region0: #{decoder_forward_seq.1}
  #allocation0 [shape = 'u32[]', space=smem, size = 0x4, offset = 0x4, fixed_abs, tag = 'smem constant byte address 0x4 - core index']
  #allocation1 [shape = 'u32[72,128]{1,0:T(1,128)}', space=vmem, size = 0x9000, scoped, tag = 'internal scratch']
  %s0 = inlined_call_operand.vmem [shape: f32[1,8,128], index: 0, kind: input, shape index: {}]
  %s1 = inlined_call_operand.vmem [shape: f32[8,128], index: 1, kind: input, shape index: {}]
  %s2 = inlined_call_operand.vmem [shape: f32[8,128], index: 2, kind: input, shape index: {}]
  %s3 = inlined_call_operand.hbm [shape: bf16[128,512], index: 3, kind: input, shape index: {}]
  %s4 = inlined_call_operand.hbm [shape: bf16[128,512], index: 4, kind: input, shape index: {}]
  %s5 = inlined_call_operand.vmem [shape: f32[1,512], index: 5, kind: input, shape index: {}]
  %s6 = inlined_call_operand.hbm [shape: bf16[128,128], index: 6, kind: input, shape index: {}]
  %s7 = inlined_call_operand.vmem [shape: f32[1,128], index: 7, kind: input, shape index: {}]
  %s8 = inlined_call_operand.hbm [shape: bf16[128,128], index: 8, kind: input, shape index: {}]
  %s9 = inlined_call_operand.vmem [shape: f32[1,128], index: 9, kind: input, shape index: {}]
  %s10 = inlined_call_operand.vmem [shape: f32[1,8,128], index: 10, kind: output, shape index: {0}]
  %s11 = inlined_call_operand.vmem [shape: f32[8,128], index: 11, kind: output, shape index: {1}]
  %s12 = inlined_call_operand.vmem [shape: f32[8,128], index: 12, kind: output, shape index: {2}]
  %13 = xla_tuple %s10, %s11, %s12
  %s14 = sld [smem:[#allocation0]]
  $region86: #{decoder_forward_seq.1} parent=0
    _
  %s16 = ssub.s32 1, %s14
  %s17 = scalar_select 0, %s16, %s14
  $region1: #{decoder_forward_seq.1} parent=0
    #allocation2 [shape = 'u8[131072]{0}', space=vmem, size = 0x20000, scoped, tag = 'input window, operand 3, single buffered']
    #allocation3 [shape = 's32[1]{0}', space=sflag, size = 0x4, scoped, tag = 'scoped memory for decoder_forward_seq.1']
    #allocation4 [shape = 'u8[131072]{0}', space=vmem, size = 0x20000, scoped, tag = 'input window, operand 4, single buffered']
    #allocation5 [shape = 's32[1]{0}', space=sflag, size = 0x4, scoped, tag = 'scoped memory for decoder_forward_seq.1']
    #allocation6 [shape = 'u8[32768]{0}', space=vmem, size = 0x8000, scoped, tag = 'input window, operand 6, single buffered']
    #allocation7 [shape = 'u8[32768]{0}', space=vmem, size = 0x8000, scoped, tag = 'input window, operand 8, single buffered']
    #allocation8 [shape = 's32[1]{0}', space=sflag, size = 0x4, scoped, tag = 'scoped memory for decoder_forward_seq.1']
    %18 = vsyncpa [#allocation3], 0
    %19 = vsyncpa [#allocation5], 0
    %20 = vsyncpa [#allocation8], 0
    // Predicated region
    $region2: #{decoder_forward_seq.1} parent=1 // pred_check
      _
    $region3: #{decoder_forward_seq.1} parent=1 // pred_check_branch
      %22 = sbr.rel (0) target = $region5
    $region4: #{decoder_forward_seq.1} parent=1 // pred_region
      _
    $region5: #{decoder_forward_seq.1} parent=1 // pred_fallthru
      _
    // Predicated region
    $region6: #{decoder_forward_seq.1} parent=1 // pred_check
      _
    $region7: #{decoder_forward_seq.1} parent=1 // pred_check_branch
      %24 = sbr.rel (0) target = $region9
    $region8: #{decoder_forward_seq.1} parent=1 // pred_region
      _
    $region9: #{decoder_forward_seq.1} parent=1 // pred_fallthru
      _
    // Predicated region
    $region10: #{decoder_forward_seq.1} parent=1 // pred_check
      _
    $region11: #{decoder_forward_seq.1} parent=1 // pred_check_branch
      %26 = sbr.rel (0) target = $region13
    $region12: #{decoder_forward_seq.1} parent=1 // pred_region
      _
    $region13: #{decoder_forward_seq.1} parent=1 // pred_fallthru
      _
    // Predicated region
    $region14: #{decoder_forward_seq.1} parent=1 // pred_check
      _
    $region15: #{decoder_forward_seq.1} parent=1 // pred_check_branch
      %28 = sbr.rel (0) target = $region17
    $region16: #{decoder_forward_seq.1} parent=1 // pred_region
      %30 = vsyncadd [#allocation3], 0
      %s31 = sshll.u32 %s3, 4
      %s32 = int_to_ptr.hbm [resolvable:$true] %s31
      %s33 = sshll.u32 [#allocation2], 4
      %s34 = int_to_ptr.vmem [resolvable:$true] %s33
      %39 = dma.hbm_to_vmem [thread:$0]  %s32, 4096, %s34, [#allocation3], 256, 256, 16
    $region17: #{decoder_forward_seq.1} parent=1 // pred_fallthru
      _
    // Predicated region
    $region18: #{decoder_forward_seq.1} parent=1 // pred_check
      _
    $region19: #{decoder_forward_seq.1} parent=1 // pred_check_branch
      %41 = sbr.rel (0) target = $region21
    $region20: #{decoder_forward_seq.1} parent=1 // pred_region
      %43 = vsyncadd [#allocation5], 0
      %s44 = sshll.u32 %s4, 4
      %s45 = int_to_ptr.hbm [resolvable:$true] %s44
      %s46 = sshll.u32 [#allocation4], 4
      %s47 = int_to_ptr.vmem [resolvable:$true] %s46
      %52 = dma.hbm_to_vmem [thread:$0]  %s45, 4096, %s47, [#allocation5], 256, 256, 16
    $region21: #{decoder_forward_seq.1} parent=1 // pred_fallthru
      _
    // Predicated region
    $region22: #{decoder_forward_seq.1} parent=1 // pred_check
      _
    $region23: #{decoder_forward_seq.1} parent=1 // pred_check_branch
      %54 = sbr.rel (0) target = $region25
    $region24: #{decoder_forward_seq.1} parent=1 // pred_region
      _
    $region25: #{decoder_forward_seq.1} parent=1 // pred_fallthru
      _
    // Predicated region
    $region26: #{decoder_forward_seq.1} parent=1 // pred_check
      _
    $region27: #{decoder_forward_seq.1} parent=1 // pred_check_branch
      %56 = sbr.rel (0) target = $region29
    $region28: #{decoder_forward_seq.1} parent=1 // pred_region
      %58 = vsyncadd [#allocation5], 0
      %s59 = sshll.u32 %s6, 4
      %s60 = int_to_ptr.hbm [resolvable:$true] %s59
      %s61 = sshll.u32 [#allocation6], 4
      %s62 = int_to_ptr.vmem [resolvable:$true] %s61
      %67 = dma.hbm_to_vmem [thread:$0]  %s60, 1024, %s62, [#allocation5], 64, 64, 4
    $region29: #{decoder_forward_seq.1} parent=1 // pred_fallthru
      _
    // Predicated region
    $region30: #{decoder_forward_seq.1} parent=1 // pred_check
      _
    $region31: #{decoder_forward_seq.1} parent=1 // pred_check_branch
      %69 = sbr.rel (0) target = $region33
    $region32: #{decoder_forward_seq.1} parent=1 // pred_region
      _
    $region33: #{decoder_forward_seq.1} parent=1 // pred_fallthru
      _
    // Predicated region
    $region34: #{decoder_forward_seq.1} parent=1 // pred_check
      _
    $region35: #{decoder_forward_seq.1} parent=1 // pred_check_branch
      %71 = sbr.rel (0) target = $region37
    $region36: #{decoder_forward_seq.1} parent=1 // pred_region
      %73 = vsyncadd [#allocation8], 0
      %s74 = sshll.u32 %s8, 4
      %s75 = int_to_ptr.hbm [resolvable:$true] %s74
      %s76 = sshll.u32 [#allocation7], 4
      %s77 = int_to_ptr.vmem [resolvable:$true] %s76
      %82 = dma.hbm_to_vmem [thread:$0]  %s75, 1024, %s77, [#allocation8], 64, 64, 4
    $region37: #{decoder_forward_seq.1} parent=1 // pred_fallthru
      _
    // Predicated region
    $region38: #{decoder_forward_seq.1} parent=1 // pred_check
      _
    $region39: #{decoder_forward_seq.1} parent=1 // pred_check_branch
      %84 = sbr.rel (0) target = $region41
    $region40: #{decoder_forward_seq.1} parent=1 // pred_region
      _
    $region41: #{decoder_forward_seq.1} parent=1 // pred_fallthru
      _
    // Predicated region
    $region42: #{decoder_forward_seq.1} parent=1 // pred_check
      _
    $region43: #{decoder_forward_seq.1} parent=1 // pred_check_branch
      %86 = sbr.rel (0) target = $region45
    $region44: #{decoder_forward_seq.1} parent=1 // pred_region
      %88 = dma.done [#allocation3], 4096
    $region45: #{decoder_forward_seq.1} parent=1 // pred_fallthru
      _
    // Predicated region
    $region46: #{decoder_forward_seq.1} parent=1 // pred_check
      _
    $region47: #{decoder_forward_seq.1} parent=1 // pred_check_branch
      %90 = sbr.rel (0) target = $region49
    $region48: #{decoder_forward_seq.1} parent=1 // pred_region
      %92 = dma.done [#allocation5], 4096
    $region49: #{decoder_forward_seq.1} parent=1 // pred_fallthru
      _
    // Predicated region
    $region50: #{decoder_forward_seq.1} parent=1 // pred_check
      _
    $region51: #{decoder_forward_seq.1} parent=1 // pred_check_branch
      %94 = sbr.rel (0) target = $region53
    $region52: #{decoder_forward_seq.1} parent=1 // pred_region
      %96 = dma.done [#allocation5], 1024
    $region53: #{decoder_forward_seq.1} parent=1 // pred_fallthru
      _
    // Predicated region
    $region54: #{decoder_forward_seq.1} parent=1 // pred_check
      _
    $region55: #{decoder_forward_seq.1} parent=1 // pred_check_branch
      %98 = sbr.rel (0) target = $region57
    $region56: #{decoder_forward_seq.1} parent=1 // pred_region
      %100 = dma.done [#allocation8], 1024
    $region57: #{decoder_forward_seq.1} parent=1 // pred_fallthru
      _
    %p101 = scmp.eq.s32.totalorder 0, 0
    // Predicated region
    $region58: #{decoder_forward_seq.1} parent=1 // pred_check
      %p102 = pneg %p101
    $region59: #{decoder_forward_seq.1} parent=1 // pred_check_branch
      %104 = sbr.rel (%p102) target = $region61
    $region60: #{decoder_forward_seq.1} parent=1 // pred_region
      %v105 = vld [vmem:[%s1] sm:$0xff]
      %106 = vst [vmem:[%s11] sm:$0xff] %v105
      %v107 = vld [vmem:[%s2] sm:$0xff]
      %108 = vst [vmem:[%s12] sm:$0xff] %v107
    $region61: #{decoder_forward_seq.1} parent=1 // pred_fallthru
      _
    %v109 = vld [vmem:[%s0] sm:$0xff]
    %v110 = vpack.c.bf16 %v109, %v109
    %v111 = vld [vmem:[%s11] sm:$0xff]
    %v112 = vld [vmem:[#allocation2] sm:$0xff]
    %v113 = vld [vmem:[#allocation2 + $0x8] sm:$0xff]
    %v114 = vld [vmem:[#allocation2 + $0x10] sm:$0xff]
    %v115 = vld [vmem:[#allocation2 + $0x18] sm:$0xff]
    %v116 = vld [vmem:[#allocation2 + $0x20] sm:$0xff]
    %v117 = vld [vmem:[#allocation2 + $0x28] sm:$0xff]
    %v118 = vld [vmem:[#allocation2 + $0x30] sm:$0xff]
    %v119 = vld [vmem:[#allocation2 + $0x38] sm:$0xff]
    %v120 = vld [vmem:[#allocation2 + $0x40] sm:$0xff]
    %v121 = vld [vmem:[#allocation2 + $0x48] sm:$0xff]
    %v122 = vld [vmem:[#allocation2 + $0x50] sm:$0xff]
    %v123 = vld [vmem:[#allocation2 + $0x58] sm:$0xff]
    %v124 = vld [vmem:[#allocation2 + $0x60] sm:$0xff]
    %v125 = vld [vmem:[#allocation2 + $0x68] sm:$0xff]
    %v126 = vld [vmem:[#allocation2 + $0x70] sm:$0xff]
    %v127 = vld [vmem:[#allocation2 + $0x78] sm:$0xff]
    %v128 = vld [vmem:[#allocation2 + $0x80] sm:$0xff]
    %v129 = vld [vmem:[#allocation2 + $0x88] sm:$0xff]
    %v130 = vld [vmem:[#allocation2 + $0x90] sm:$0xff]
    %v131 = vld [vmem:[#allocation2 + $0x98] sm:$0xff]
    %v132 = vld [vmem:[#allocation2 + $0xa0] sm:$0xff]
    %v133 = vld [vmem:[#allocation2 + $0xa8] sm:$0xff]
    %v134 = vld [vmem:[#allocation2 + $0xb0] sm:$0xff]
    %v135 = vld [vmem:[#allocation2 + $0xb8] sm:$0xff]
    %v136 = vld [vmem:[#allocation2 + $0xc0] sm:$0xff]
    %v137 = vld [vmem:[#allocation2 + $0xc8] sm:$0xff]
    %v138 = vld [vmem:[#allocation2 + $0xd0] sm:$0xff]
    %v139 = vld [vmem:[#allocation2 + $0xd8] sm:$0xff]
    %v140 = vld [vmem:[#allocation2 + $0xe0] sm:$0xff]
    %v141 = vld [vmem:[#allocation2 + $0xe8] sm:$0xff]
    %v142 = vld [vmem:[#allocation2 + $0xf0] sm:$0xff]
    %v143 = vld [vmem:[#allocation2 + $0xf8] sm:$0xff]
    %v144 = vpack.c.bf16 %v111, %v111
    %v145 = vld [vmem:[#allocation4] sm:$0xff]
    %v146 = vld [vmem:[#allocation4 + $0x8] sm:$0xff]
    %v147 = vld [vmem:[#allocation4 + $0x10] sm:$0xff]
    %v148 = vld [vmem:[#allocation4 + $0x18] sm:$0xff]
    %v149 = vld [vmem:[#allocation4 + $0x20] sm:$0xff]
    %v150 = vld [vmem:[#allocation4 + $0x28] sm:$0xff]
    %v151 = vld [vmem:[#allocation4 + $0x30] sm:$0xff]
    %v152 = vld [vmem:[#allocation4 + $0x38] sm:$0xff]
    %v153 = vld [vmem:[#allocation4 + $0x40] sm:$0xff]
    %v154 = vld [vmem:[#allocation4 + $0x48] sm:$0xff]
    %v155 = vld [vmem:[#allocation4 + $0x50] sm:$0xff]
    %v156 = vld [vmem:[#allocation4 + $0x58] sm:$0xff]
    %v157 = vld [vmem:[#allocation4 + $0x60] sm:$0xff]
    %v158 = vld [vmem:[#allocation4 + $0x68] sm:$0xff]
    %v159 = vld [vmem:[#allocation4 + $0x70] sm:$0xff]
    %v160 = vld [vmem:[#allocation4 + $0x78] sm:$0xff]
    %v161 = vld [vmem:[#allocation4 + $0x80] sm:$0xff]
    %v162 = vld [vmem:[#allocation4 + $0x88] sm:$0xff]
    %v163 = vld [vmem:[#allocation4 + $0x90] sm:$0xff]
    %v164 = vld [vmem:[#allocation4 + $0x98] sm:$0xff]
    %v165 = vld [vmem:[#allocation4 + $0xa0] sm:$0xff]
    %v166 = vld [vmem:[#allocation4 + $0xa8] sm:$0xff]
    %v167 = vld [vmem:[#allocation4 + $0xb0] sm:$0xff]
    %v168 = vld [vmem:[#allocation4 + $0xb8] sm:$0xff]
    %v169 = vld [vmem:[#allocation4 + $0xc0] sm:$0xff]
    %v170 = vld [vmem:[#allocation4 + $0xc8] sm:$0xff]
    %v171 = vld [vmem:[#allocation4 + $0xd0] sm:$0xff]
    %v172 = vld [vmem:[#allocation4 + $0xd8] sm:$0xff]
    %v173 = vld [vmem:[#allocation4 + $0xe0] sm:$0xff]
    %v174 = vld [vmem:[#allocation4 + $0xe8] sm:$0xff]
    %v175 = vld [vmem:[#allocation4 + $0xf0] sm:$0xff]
    %v176 = vld [vmem:[#allocation4 + $0xf8] sm:$0xff]
    %v209 = vunpack.c.l.b16 %v145
    %v210 = vunpack.c.h.b16 %v145
    %v211 = vunpack.c.l.b16 %v146
    %v212 = vunpack.c.h.b16 %v146
    %v213 = vunpack.c.l.b16 %v147
    %v214 = vunpack.c.h.b16 %v147
    %v215 = vunpack.c.l.b16 %v148
    %v216 = vunpack.c.h.b16 %v148
    %v217 = vunpack.c.l.b16 %v149
    %v218 = vunpack.c.h.b16 %v149
    %v219 = vunpack.c.l.b16 %v150
    %v220 = vunpack.c.h.b16 %v150
    %v221 = vunpack.c.l.b16 %v151
    %v222 = vunpack.c.h.b16 %v151
    %v223 = vunpack.c.l.b16 %v152
    %v224 = vunpack.c.h.b16 %v152
    %v225 = vunpack.c.l.b16 %v153
    %v226 = vunpack.c.h.b16 %v153
    %v227 = vunpack.c.l.b16 %v154
    %v228 = vunpack.c.h.b16 %v154
    %v229 = vunpack.c.l.b16 %v155
    %v230 = vunpack.c.h.b16 %v155
    %v231 = vunpack.c.l.b16 %v156
    %v232 = vunpack.c.h.b16 %v156
    %v233 = vunpack.c.l.b16 %v157
    %v234 = vunpack.c.h.b16 %v157
    %v235 = vunpack.c.l.b16 %v158
    %v236 = vunpack.c.h.b16 %v158
    %v237 = vunpack.c.l.b16 %v159
    %v238 = vunpack.c.h.b16 %v159
    %v239 = vunpack.c.l.b16 %v160
    %v240 = vunpack.c.h.b16 %v160
    %v241 = vunpack.c.l.b16 %v161
    %v242 = vunpack.c.h.b16 %v161
    %v243 = vunpack.c.l.b16 %v162
    %v244 = vunpack.c.h.b16 %v162
    %v245 = vunpack.c.l.b16 %v163
    %v246 = vunpack.c.h.b16 %v163
    %v247 = vunpack.c.l.b16 %v164
    %v248 = vunpack.c.h.b16 %v164
    %v249 = vunpack.c.l.b16 %v165
    %v250 = vunpack.c.h.b16 %v165
    %v251 = vunpack.c.l.b16 %v166
    %v252 = vunpack.c.h.b16 %v166
    %v253 = vunpack.c.l.b16 %v167
    %v254 = vunpack.c.h.b16 %v167
    %v255 = vunpack.c.l.b16 %v168
    %v256 = vunpack.c.h.b16 %v168
    %v257 = vunpack.c.l.b16 %v169
    %v258 = vunpack.c.h.b16 %v169
    %v259 = vunpack.c.l.b16 %v170
    %v260 = vunpack.c.h.b16 %v170
    %v261 = vunpack.c.l.b16 %v171
    %v262 = vunpack.c.h.b16 %v171
    %v263 = vunpack.c.l.b16 %v172
    %v264 = vunpack.c.h.b16 %v172
    %v265 = vunpack.c.l.b16 %v173
    %v266 = vunpack.c.h.b16 %v173
    %v267 = vunpack.c.l.b16 %v174
    %v268 = vunpack.c.h.b16 %v174
    %v269 = vunpack.c.l.b16 %v175
    %v270 = vunpack.c.h.b16 %v175
    %v271 = vunpack.c.l.b16 %v176
    %v272 = vunpack.c.h.b16 %v176
    %v273 = vpack.c.b16 %v213, %v209
    %v274 = vpack.c.b16 %v214, %v210
    %v275 = vpack.c.b16 %v215, %v211
    %v276 = vpack.c.b16 %v216, %v212
    %v277 = vpack.c.b16 %v221, %v217
    %v278 = vpack.c.b16 %v222, %v218
    %v279 = vpack.c.b16 %v223, %v219
    %v280 = vpack.c.b16 %v224, %v220
    %v281 = vpack.c.b16 %v229, %v225
    %v282 = vpack.c.b16 %v230, %v226
    %v283 = vpack.c.b16 %v231, %v227
    %v284 = vpack.c.b16 %v232, %v228
    %v285 = vpack.c.b16 %v237, %v233
    %v286 = vpack.c.b16 %v238, %v234
    %v287 = vpack.c.b16 %v239, %v235
    %v288 = vpack.c.b16 %v240, %v236
    %v289 = vpack.c.b16 %v245, %v241
    %v290 = vpack.c.b16 %v246, %v242
    %v291 = vpack.c.b16 %v247, %v243
    %v292 = vpack.c.b16 %v248, %v244
    %v293 = vpack.c.b16 %v253, %v249
    %v294 = vpack.c.b16 %v254, %v250
    %v295 = vpack.c.b16 %v255, %v251
    %v296 = vpack.c.b16 %v256, %v252
    %v297 = vpack.c.b16 %v261, %v257
    %v298 = vpack.c.b16 %v262, %v258
    %v299 = vpack.c.b16 %v263, %v259
    %v300 = vpack.c.b16 %v264, %v260
    %v301 = vpack.c.b16 %v269, %v265
    %v302 = vpack.c.b16 %v270, %v266
    %v303 = vpack.c.b16 %v271, %v267
    %v304 = vpack.c.b16 %v272, %v268
    %337 = vmatpush.bf16.msra.mxu0 %v301
    %338 = vmatpush.bf16.msra.mxu0 %v297
    %339 = vmatpush.bf16.msra.mxu0 %v293
    %340 = vmatpush.bf16.msra.mxu0 %v289
    %341 = vmatpush.bf16.msra.mxu0 %v285
    %342 = vmatpush.bf16.msra.mxu0 %v281
    %343 = vmatpush.bf16.msra.mxu0 %v277
    %344 = vmatpush.bf16.msra.mxu0 %v273
    %345 = vmatmul.bf16.gmra.mxu0 %v144
    %v346 = vpop.f32.mrf.mxu0
    %v347 = vadd.f32 0.0, %v346
    %v348 = vpop.f32.mrf.mxu0
    %349 = vdwg.mxu0
    %350 = vmatpush.bf16.msra.mxu0 %v302
    %351 = vmatpush.bf16.msra.mxu0 %v298
    %352 = vmatpush.bf16.msra.mxu0 %v294
    %353 = vmatpush.bf16.msra.mxu0 %v290
    %354 = vmatpush.bf16.msra.mxu0 %v286
    %355 = vmatpush.bf16.msra.mxu0 %v282
    %356 = vmatpush.bf16.msra.mxu0 %v278
    %357 = vmatpush.bf16.msra.mxu0 %v274
    %358 = vmatmul.bf16.gmra.mxu0 %v144
    %v359 = vpop.f32.mrf.mxu0
    %v360 = vadd.f32 0.0, %v359
    %v361 = vpop.f32.mrf.mxu0
    %362 = vdwg.mxu0
    %363 = vmatpush.bf16.msra.mxu0 %v303
    %364 = vmatpush.bf16.msra.mxu0 %v299
    %365 = vmatpush.bf16.msra.mxu0 %v295
    %366 = vmatpush.bf16.msra.mxu0 %v291
    %367 = vmatpush.bf16.msra.mxu0 %v287
    %368 = vmatpush.bf16.msra.mxu0 %v283
    %369 = vmatpush.bf16.msra.mxu0 %v279
    %370 = vmatpush.bf16.msra.mxu0 %v275
    %371 = vmatmul.bf16.gmra.mxu0 %v144
    %v372 = vpop.f32.mrf.mxu0
    %v373 = vadd.f32 0.0, %v372
    %v374 = vpop.f32.mrf.mxu0
    %375 = vdwg.mxu0
    %376 = vmatpush.bf16.msra.mxu0 %v304
    %377 = vmatpush.bf16.msra.mxu0 %v300
    %378 = vmatpush.bf16.msra.mxu0 %v296
    %379 = vmatpush.bf16.msra.mxu0 %v292
    %380 = vmatpush.bf16.msra.mxu0 %v288
    %381 = vmatpush.bf16.msra.mxu0 %v284
    %382 = vmatpush.bf16.msra.mxu0 %v280
    %383 = vmatpush.bf16.msra.mxu0 %v276
    %384 = vmatmul.bf16.gmra.mxu0 %v144
    %v385 = vpop.f32.mrf.mxu0
    %v386 = vadd.f32 0.0, %v385
    %v387 = vpop.f32.mrf.mxu0
    %388 = vdwg.mxu0
    %v421 = vunpack.c.l.b16 %v112
    %v422 = vunpack.c.h.b16 %v112
    %v423 = vunpack.c.l.b16 %v113
    %v424 = vunpack.c.h.b16 %v113
    %v425 = vunpack.c.l.b16 %v114
    %v426 = vunpack.c.h.b16 %v114
    %v427 = vunpack.c.l.b16 %v115
    %v428 = vunpack.c.h.b16 %v115
    %v429 = vunpack.c.l.b16 %v116
    %v430 = vunpack.c.h.b16 %v116
    %v431 = vunpack.c.l.b16 %v117
    %v432 = vunpack.c.h.b16 %v117
    %v433 = vunpack.c.l.b16 %v118
    %v434 = vunpack.c.h.b16 %v118
    %v435 = vunpack.c.l.b16 %v119
    %v436 = vunpack.c.h.b16 %v119
    %v437 = vunpack.c.l.b16 %v120
    %v438 = vunpack.c.h.b16 %v120
    %v439 = vunpack.c.l.b16 %v121
    %v440 = vunpack.c.h.b16 %v121
    %v441 = vunpack.c.l.b16 %v122
    %v442 = vunpack.c.h.b16 %v122
    %v443 = vunpack.c.l.b16 %v123
    %v444 = vunpack.c.h.b16 %v123
    %v445 = vunpack.c.l.b16 %v124
    %v446 = vunpack.c.h.b16 %v124
    %v447 = vunpack.c.l.b16 %v125
    %v448 = vunpack.c.h.b16 %v125
    %v449 = vunpack.c.l.b16 %v126
    %v450 = vunpack.c.h.b16 %v126
    %v451 = vunpack.c.l.b16 %v127
    %v452 = vunpack.c.h.b16 %v127
    %v453 = vunpack.c.l.b16 %v128
    %v454 = vunpack.c.h.b16 %v128
    %v455 = vunpack.c.l.b16 %v129
    %v456 = vunpack.c.h.b16 %v129
    %v457 = vunpack.c.l.b16 %v130
    %v458 = vunpack.c.h.b16 %v130
    %v459 = vunpack.c.l.b16 %v131
    %v460 = vunpack.c.h.b16 %v131
    %v461 = vunpack.c.l.b16 %v132
    %v462 = vunpack.c.h.b16 %v132
    %v463 = vunpack.c.l.b16 %v133
    %v464 = vunpack.c.h.b16 %v133
    %v465 = vunpack.c.l.b16 %v134
    %v466 = vunpack.c.h.b16 %v134
    %v467 = vunpack.c.l.b16 %v135
    %v468 = vunpack.c.h.b16 %v135
    %v469 = vunpack.c.l.b16 %v136
    %v470 = vunpack.c.h.b16 %v136
    %v471 = vunpack.c.l.b16 %v137
    %v472 = vunpack.c.h.b16 %v137
    %v473 = vunpack.c.l.b16 %v138
    %v474 = vunpack.c.h.b16 %v138
    %v475 = vunpack.c.l.b16 %v139
    %v476 = vunpack.c.h.b16 %v139
    %v477 = vunpack.c.l.b16 %v140
    %v478 = vunpack.c.h.b16 %v140
    %v479 = vunpack.c.l.b16 %v141
    %v480 = vunpack.c.h.b16 %v141
    %v481 = vunpack.c.l.b16 %v142
    %v482 = vunpack.c.h.b16 %v142
    %v483 = vunpack.c.l.b16 %v143
    %v484 = vunpack.c.h.b16 %v143
    %v485 = vpack.c.b16 %v425, %v421
    %v486 = vpack.c.b16 %v426, %v422
    %v487 = vpack.c.b16 %v427, %v423
    %v488 = vpack.c.b16 %v428, %v424
    %v489 = vpack.c.b16 %v433, %v429
    %v490 = vpack.c.b16 %v434, %v430
    %v491 = vpack.c.b16 %v435, %v431
    %v492 = vpack.c.b16 %v436, %v432
    %v493 = vpack.c.b16 %v441, %v437
    %v494 = vpack.c.b16 %v442, %v438
    %v495 = vpack.c.b16 %v443, %v439
    %v496 = vpack.c.b16 %v444, %v440
    %v497 = vpack.c.b16 %v449, %v445
    %v498 = vpack.c.b16 %v450, %v446
    %v499 = vpack.c.b16 %v451, %v447
    %v500 = vpack.c.b16 %v452, %v448
    %v501 = vpack.c.b16 %v457, %v453
    %v502 = vpack.c.b16 %v458, %v454
    %v503 = vpack.c.b16 %v459, %v455
    %v504 = vpack.c.b16 %v460, %v456
    %v505 = vpack.c.b16 %v465, %v461
    %v506 = vpack.c.b16 %v466, %v462
    %v507 = vpack.c.b16 %v467, %v463
    %v508 = vpack.c.b16 %v468, %v464
    %v509 = vpack.c.b16 %v473, %v469
    %v510 = vpack.c.b16 %v474, %v470
    %v511 = vpack.c.b16 %v475, %v471
    %v512 = vpack.c.b16 %v476, %v472
    %v513 = vpack.c.b16 %v481, %v477
    %v514 = vpack.c.b16 %v482, %v478
    %v515 = vpack.c.b16 %v483, %v479
    %v516 = vpack.c.b16 %v484, %v480
    %549 = vmatpush.bf16.msra.mxu0 %v513
    %550 = vmatpush.bf16.msra.mxu0 %v509
    %551 = vmatpush.bf16.msra.mxu0 %v505
    %552 = vmatpush.bf16.msra.mxu0 %v501
    %553 = vmatpush.bf16.msra.mxu0 %v497
    %554 = vmatpush.bf16.msra.mxu0 %v493
    %555 = vmatpush.bf16.msra.mxu0 %v489
    %556 = vmatpush.bf16.msra.mxu0 %v485
    %557 = vmatmul.bf16.gmra.mxu0 %v110
    %v558 = vpop.f32.mrf.mxu0
    %v559 = vadd.f32 %v347, %v558
    %v560 = vpop.f32.mrf.mxu0
    %561 = vdwg.mxu0
    %562 = vmatpush.bf16.msra.mxu0 %v514
    %563 = vmatpush.bf16.msra.mxu0 %v510
    %564 = vmatpush.bf16.msra.mxu0 %v506
    %565 = vmatpush.bf16.msra.mxu0 %v502
    %566 = vmatpush.bf16.msra.mxu0 %v498
    %567 = vmatpush.bf16.msra.mxu0 %v494
    %568 = vmatpush.bf16.msra.mxu0 %v490
    %569 = vmatpush.bf16.msra.mxu0 %v486
    %570 = vmatmul.bf16.gmra.mxu0 %v110
    %v571 = vpop.f32.mrf.mxu0
    %v572 = vadd.f32 %v360, %v571
    %v573 = vpop.f32.mrf.mxu0
    %574 = vdwg.mxu0
    %575 = vmatpush.bf16.msra.mxu0 %v515
    %576 = vmatpush.bf16.msra.mxu0 %v511
    %577 = vmatpush.bf16.msra.mxu0 %v507
    %578 = vmatpush.bf16.msra.mxu0 %v503
    %579 = vmatpush.bf16.msra.mxu0 %v499
    %580 = vmatpush.bf16.msra.mxu0 %v495
    %581 = vmatpush.bf16.msra.mxu0 %v491
    %582 = vmatpush.bf16.msra.mxu0 %v487
    %583 = vmatmul.bf16.gmra.mxu0 %v110
    %v584 = vpop.f32.mrf.mxu0
    %v585 = vadd.f32 %v373, %v584
    %v586 = vpop.f32.mrf.mxu0
    %587 = vdwg.mxu0
    %588 = vmatpush.bf16.msra.mxu0 %v516
    %589 = vmatpush.bf16.msra.mxu0 %v512
    %590 = vmatpush.bf16.msra.mxu0 %v508
    %591 = vmatpush.bf16.msra.mxu0 %v504
    %592 = vmatpush.bf16.msra.mxu0 %v500
    %593 = vmatpush.bf16.msra.mxu0 %v496
    %594 = vmatpush.bf16.msra.mxu0 %v492
    %595 = vmatpush.bf16.msra.mxu0 %v488
    %596 = vmatmul.bf16.gmra.mxu0 %v110
    %v597 = vpop.f32.mrf.mxu0
    %v598 = vadd.f32 %v386, %v597
    %v599 = vpop.f32.mrf.mxu0
    %600 = vdwg.mxu0
    %v601 = vld [vmem:[%s5] sm:$0xf]
    %v603 = vperm.slane %v601, 0
    %v604 = vperm.slane %v601, 1
    %v605 = vperm.slane %v601, 2
    %v606 = vperm.slane %v601, 3
    %v611 = vadd.f32 %v559, %v603
    %v612 = vadd.f32 %v572, %v604
    %v613 = vadd.f32 %v585, %v605
    %v614 = vadd.f32 %v598, %v606
    %v615 = vxor.u32 %v611, 2147483648
    %v616 = vmul.f32 %v615, 1.442695
    %v617 = vpow.pop %v616
    %v618 = vadd.f32 %v617, 1.0
    %v619 = vrcp.pop %v618
    %v620 = vmul.f32 %v618, %v619
    %v621 = vsub.f32 1.0, %v620
    %v622 = vmul.f32 %v619, %v621
    %v623 = vadd.f32 %v619, %v622
    %vm624 = vweird.f32 %v618
    %vm625 = vweird.f32 %v619
    %vm626 = vmor %vm624, %vm625
    %v627 = vsel %vm626, %v619, %v623
    %v628 = vand.u32 2147483647, %v618
    %vm629 = vcmp.eq.f32.partialorder %v628, 8.507059e+37
    %v630 = vand.u32 %v618, 2147483648
    %v631 = vor.u32 1.1754944e-38, %v630
    %v632 = vsel %vm629, %v631, %v627
    %v633 = vmul.f32 1.0, %v632
    %v634 = vxor.u32 %v612, 2147483648
    %v635 = vmul.f32 %v634, 1.442695
    %v636 = vpow.pop %v635
    %v637 = vadd.f32 %v636, 1.0
    %v638 = vrcp.pop %v637
    %v639 = vmul.f32 %v637, %v638
    %v640 = vsub.f32 1.0, %v639
    %v641 = vmul.f32 %v638, %v640
    %v642 = vadd.f32 %v638, %v641
    %vm643 = vweird.f32 %v637
    %vm644 = vweird.f32 %v638
    %vm645 = vmor %vm643, %vm644
    %v646 = vsel %vm645, %v638, %v642
    %v647 = vand.u32 2147483647, %v637
    %vm648 = vcmp.eq.f32.partialorder %v647, 8.507059e+37
    %v649 = vand.u32 %v637, 2147483648
    %v650 = vor.u32 1.1754944e-38, %v649
    %v651 = vsel %vm648, %v650, %v646
    %v652 = vmul.f32 1.0, %v651
    %v653 = vtanh.pop %v613
    %v654 = vxor.u32 %v614, 2147483648
    %v655 = vmul.f32 %v654, 1.442695
    %v656 = vpow.pop %v655
    %v657 = vadd.f32 %v656, 1.0
    %v658 = vrcp.pop %v657
    %v659 = vmul.f32 %v657, %v658
    %v660 = vsub.f32 1.0, %v659
    %v661 = vmul.f32 %v658, %v660
    %v662 = vadd.f32 %v658, %v661
    %vm663 = vweird.f32 %v657
    %vm664 = vweird.f32 %v658
    %vm665 = vmor %vm663, %vm664
    %v666 = vsel %vm665, %v658, %v662
    %v667 = vand.u32 2147483647, %v657
    %vm668 = vcmp.eq.f32.partialorder %v667, 8.507059e+37
    %v669 = vand.u32 %v657, 2147483648
    %v670 = vor.u32 1.1754944e-38, %v669
    %v671 = vsel %vm668, %v670, %v666
    %v672 = vmul.f32 1.0, %v671
    %v673 = vld [vmem:[%s12] sm:$0xff]
    %v674 = vmul.f32 %v652, %v673
    %v675 = vmul.f32 %v633, %v653
    %v676 = vadd.f32 %v674, %v675
    %v677 = vtanh.pop %v676
    %v678 = vmul.f32 %v672, %v677
    %679 = vst [vmem:[%s12] sm:$0xff] %v676
    %680 = vst [vmem:[%s11] sm:$0xff] %v678
    %v681 = vpack.c.bf16 %v678, %v678
    %v682 = vld [vmem:[#allocation6] sm:$0xf]
    %v683 = vld [vmem:[#allocation6 + $0x4] sm:$0xf]
    %v684 = vld [vmem:[#allocation6 + $0x8] sm:$0xf]
    %v685 = vld [vmem:[#allocation6 + $0xc] sm:$0xf]
    %v686 = vld [vmem:[#allocation6 + $0x10] sm:$0xf]
    %v687 = vld [vmem:[#allocation6 + $0x14] sm:$0xf]
    %v688 = vld [vmem:[#allocation6 + $0x18] sm:$0xf]
    %v689 = vld [vmem:[#allocation6 + $0x1c] sm:$0xf]
    %v690 = vld [vmem:[#allocation6 + $0x20] sm:$0xf]
    %v691 = vld [vmem:[#allocation6 + $0x24] sm:$0xf]
    %v692 = vld [vmem:[#allocation6 + $0x28] sm:$0xf]
    %v693 = vld [vmem:[#allocation6 + $0x2c] sm:$0xf]
    %v694 = vld [vmem:[#allocation6 + $0x30] sm:$0xf]
    %v695 = vld [vmem:[#allocation6 + $0x34] sm:$0xf]
    %v696 = vld [vmem:[#allocation6 + $0x38] sm:$0xf]
    %v697 = vld [vmem:[#allocation6 + $0x3c] sm:$0xf]
    %v698 = vld [vmem:[%s7] sm:$0x1]
    %v700 = vperm.slane %v698, 0
    %v718 = vunpack.c.l.b16 %v682
    %v719 = vunpack.c.l.b16 %v683
    %v720 = vunpack.c.l.b16 %v684
    %v721 = vunpack.c.l.b16 %v685
    %v722 = vunpack.c.l.b16 %v686
    %v723 = vunpack.c.l.b16 %v687
    %v724 = vunpack.c.l.b16 %v688
    %v725 = vunpack.c.l.b16 %v689
    %v726 = vunpack.c.l.b16 %v690
    %v727 = vunpack.c.l.b16 %v691
    %v728 = vunpack.c.l.b16 %v692
    %v729 = vunpack.c.l.b16 %v693
    %v730 = vunpack.c.l.b16 %v694
    %v731 = vunpack.c.l.b16 %v695
    %v732 = vunpack.c.l.b16 %v696
    %v733 = vunpack.c.l.b16 %v697
    %v734 = vpack.c.b16 %v719, %v718
    %v735 = vpack.c.b16 %v721, %v720
    %v736 = vpack.c.b16 %v723, %v722
    %v737 = vpack.c.b16 %v725, %v724
    %v738 = vpack.c.b16 %v727, %v726
    %v739 = vpack.c.b16 %v729, %v728
    %v740 = vpack.c.b16 %v731, %v730
    %v741 = vpack.c.b16 %v733, %v732
    %750 = vmatpush.bf16.msra.mxu0 %v741
    %751 = vmatpush.bf16.msra.mxu0 %v740
    %752 = vmatpush.bf16.msra.mxu0 %v739
    %753 = vmatpush.bf16.msra.mxu0 %v738
    %754 = vmatpush.bf16.msra.mxu0 %v737
    %755 = vmatpush.bf16.msra.mxu0 %v736
    %756 = vmatpush.bf16.msra.mxu0 %v735
    %757 = vmatpush.bf16.msra.mxu0 %v734
    %758 = vmatmul.bf16.gmra.mxu0 %v681
    %v759 = vpop.f32.mrf.mxu0
    %v760 = vadd.f32 %v700, %v759
    %v761 = vpop.f32.mrf.mxu0
    %762 = vdwg.mxu0
    %v763 = vmax.f32 %v760, 0.0
    %v764 = vpack.c.bf16 %v763, %v763
    %v765 = vld [vmem:[#allocation7] sm:$0xf]
    %v766 = vld [vmem:[#allocation7 + $0x4] sm:$0xf]
    %v767 = vld [vmem:[#allocation7 + $0x8] sm:$0xf]
    %v768 = vld [vmem:[#allocation7 + $0xc] sm:$0xf]
    %v769 = vld [vmem:[#allocation7 + $0x10] sm:$0xf]
    %v770 = vld [vmem:[#allocation7 + $0x14] sm:$0xf]
    %v771 = vld [vmem:[#allocation7 + $0x18] sm:$0xf]
    %v772 = vld [vmem:[#allocation7 + $0x1c] sm:$0xf]
    %v773 = vld [vmem:[#allocation7 + $0x20] sm:$0xf]
    %v774 = vld [vmem:[#allocation7 + $0x24] sm:$0xf]
    %v775 = vld [vmem:[#allocation7 + $0x28] sm:$0xf]
    %v776 = vld [vmem:[#allocation7 + $0x2c] sm:$0xf]
    %v777 = vld [vmem:[#allocation7 + $0x30] sm:$0xf]
    %v778 = vld [vmem:[#allocation7 + $0x34] sm:$0xf]
    %v779 = vld [vmem:[#allocation7 + $0x38] sm:$0xf]
    %v780 = vld [vmem:[#allocation7 + $0x3c] sm:$0xf]
    %v781 = vld [vmem:[%s9] sm:$0x1]
    %v783 = vperm.slane %v781, 0
    %v801 = vunpack.c.l.b16 %v765
    %v802 = vunpack.c.l.b16 %v766
    %v803 = vunpack.c.l.b16 %v767
    %v804 = vunpack.c.l.b16 %v768
    %v805 = vunpack.c.l.b16 %v769
    %v806 = vunpack.c.l.b16 %v770
    %v807 = vunpack.c.l.b16 %v771
    %v808 = vunpack.c.l.b16 %v772
    %v809 = vunpack.c.l.b16 %v773
    %v810 = vunpack.c.l.b16 %v774
    %v811 = vunpack.c.l.b16 %v775
    %v812 = vunpack.c.l.b16 %v776
    %v813 = vunpack.c.l.b16 %v777
    %v814 = vunpack.c.l.b16 %v778
    %v815 = vunpack.c.l.b16 %v779
    %v816 = vunpack.c.l.b16 %v780
    %v817 = vpack.c.b16 %v802, %v801
    %v818 = vpack.c.b16 %v804, %v803
    %v819 = vpack.c.b16 %v806, %v805
    %v820 = vpack.c.b16 %v808, %v807
    %v821 = vpack.c.b16 %v810, %v809
    %v822 = vpack.c.b16 %v812, %v811
    %v823 = vpack.c.b16 %v814, %v813
    %v824 = vpack.c.b16 %v816, %v815
    %833 = vmatpush.bf16.msra.mxu0 %v824
    %834 = vmatpush.bf16.msra.mxu0 %v823
    %835 = vmatpush.bf16.msra.mxu0 %v822
    %836 = vmatpush.bf16.msra.mxu0 %v821
    %837 = vmatpush.bf16.msra.mxu0 %v820
    %838 = vmatpush.bf16.msra.mxu0 %v819
    %839 = vmatpush.bf16.msra.mxu0 %v818
    %840 = vmatpush.bf16.msra.mxu0 %v817
    %841 = vmatmul.bf16.gmra.mxu0 %v764
    %v842 = vpop.f32.mrf.mxu0
    %v843 = vadd.f32 %v783, %v842
    %v844 = vpop.f32.mrf.mxu0
    %845 = vdwg.mxu0
    %846 = vst [vmem:[%s10] sm:$0xff] %v843
    // Predicated region
    $region62: #{decoder_forward_seq.1} parent=1 // pred_check
      _
    $region63: #{decoder_forward_seq.1} parent=1 // pred_check_branch
      %848 = sbr.rel (0) target = $region65
    $region64: #{decoder_forward_seq.1} parent=1 // pred_region
      _
    $region65: #{decoder_forward_seq.1} parent=1 // pred_fallthru
      _
    // Predicated region
    $region66: #{decoder_forward_seq.1} parent=1 // pred_check
      _
    $region67: #{decoder_forward_seq.1} parent=1 // pred_check_branch
      %850 = sbr.rel (0) target = $region69
    $region68: #{decoder_forward_seq.1} parent=1 // pred_region
      _
    $region69: #{decoder_forward_seq.1} parent=1 // pred_fallthru
      _
    // Predicated region
    $region70: #{decoder_forward_seq.1} parent=1 // pred_check
      _
    $region71: #{decoder_forward_seq.1} parent=1 // pred_check_branch
      %852 = sbr.rel (0) target = $region73
    $region72: #{decoder_forward_seq.1} parent=1 // pred_region
      _
    $region73: #{decoder_forward_seq.1} parent=1 // pred_fallthru
      _
    // Predicated region
    $region74: #{decoder_forward_seq.1} parent=1 // pred_check
      _
    $region75: #{decoder_forward_seq.1} parent=1 // pred_check_branch
      %854 = sbr.rel (0) target = $region77
    $region76: #{decoder_forward_seq.1} parent=1 // pred_region
      _
    $region77: #{decoder_forward_seq.1} parent=1 // pred_fallthru
      _
    // Predicated region
    $region78: #{decoder_forward_seq.1} parent=1 // pred_check
      _
    $region79: #{decoder_forward_seq.1} parent=1 // pred_check_branch
      %856 = sbr.rel (0) target = $region81
    $region80: #{decoder_forward_seq.1} parent=1 // pred_region
      _
    $region81: #{decoder_forward_seq.1} parent=1 // pred_fallthru
      _
    // Predicated region
    $region82: #{decoder_forward_seq.1} parent=1 // pred_check
      _
    $region83: #{decoder_forward_seq.1} parent=1 // pred_check_branch
      %858 = sbr.rel (0) target = $region85
    $region84: #{decoder_forward_seq.1} parent=1 // pred_region
      _
    $region85: #{decoder_forward_seq.1} parent=1 // pred_fallthru
      _
    %859 = vsyncpa [#allocation3], 1
    %860 = vsyncpa [#allocation5], 1
    %861 = vsyncpa [#allocation8], 1

</llo_original>
